<compile_context>
chip_gen: v5e
topology: v5e:2x2
jax: 0.10.0
libtpu: 0.0.40
codegen_flags: <defaults>
</compile_context>

<pallas_src>
import jax
import jax.numpy as jnp
from jax.experimental import pallas as pl
from jax.experimental.pallas import tpu as pltpu

# Hyperparameters implied by the module
N_EMBD = 32            # C
HIDDEN = 4 * N_EMBD    # 128 (lane-dense)
BLOCK_SIZE = 8         # T


def _ffn_kernel(x_ref, w1_ref, b_ref, w2_ref, o_ref):
    # x_ref: (TM, C)  w1_ref: (C, 4C)  b_ref: (2, 4C) f32  w2_ref: (4C, C)  o_ref: (TM, C)
    C = o_ref.shape[1]

    # In-kernel cast of x to the MXU operand dtype (bf16 by default); f32 accumulation.
    x = x_ref[...].astype(w1_ref.dtype)
    h = jnp.dot(x, w1_ref[...], preferred_element_type=jnp.float32)
    h = h + b_ref[0:1, :]                       # bias add in f32 (VPU)
    h = jnp.maximum(h, 0.0)                     # ReLU in f32 (VPU)

    # Second projection back to C (operands in matmul dtype, f32 accumulation).
    y = jnp.dot(h.astype(w2_ref.dtype), w2_ref[...],
                preferred_element_type=jnp.float32)
    y = y + b_ref[1:2, :C]                      # packed b2 lives in lanes [0, C)

    # Dropout is identity in eval-mode forward.
    o_ref[...] = y.astype(o_ref.dtype)


def prepare_params(w1, b1, w2, b2, *, matmul_dtype=jnp.bfloat16):
    """One-time (init) parameter prep: cast weights to the MXU operand dtype and
    pack both biases into a single (2, 4C) f32 buffer (b2 zero-padded to 4C lanes).

    Weights are stored transposed relative to PyTorch nn.Linear (out, in) layout,
    so projections are plain x @ W.
    """
    C, H = w1.shape
    b_packed = jnp.zeros((2, H), jnp.float32)
    b_packed = b_packed.at[0, :].set(b1.reshape(-1).astype(jnp.float32))
    b_packed = b_packed.at[1, :C].set(b2.reshape(-1).astype(jnp.float32))
    return (w1.astype(matmul_dtype), b_packed, w2.astype(matmul_dtype))


def feedforward_forward(x, params, *, block_m=512):
    """x: (B, T, C) f32; params from prepare_params -> (B, T, C) f32."""
    w1, b_packed, w2 = params
    B, T, C = x.shape
    H = w1.shape[1]
    M = B * T
    x2d = x.reshape(M, C)

    # Tile the flattened token dim only when it is large enough to benefit;
    # at toy sizes a single block (grid=(1,)) avoids per-step pipeline overhead.
    if M > block_m and M % block_m == 0:
        tm = block_m
    else:
        tm = M
    grid = (M // tm,)

    out2d = pl.pallas_call(
        _ffn_kernel,
        out_shape=jax.ShapeDtypeStruct((M, C), x.dtype),
        grid_spec=pltpu.PrefetchScalarGridSpec(
            num_scalar_prefetch=0,
            grid=grid,
            in_specs=[
                pl.BlockSpec((tm, C), lambda i: (i, 0)),   # x tile
                pl.BlockSpec((C, H), lambda i: (0, 0)),    # W1 resident across steps
                pl.BlockSpec((2, H), lambda i: (0, 0)),    # packed biases resident
                pl.BlockSpec((H, C), lambda i: (0, 0)),    # W2 resident across steps
            ],
            out_specs=pl.BlockSpec((tm, C), lambda i: (i, 0)),
        ),
        compiler_params=pltpu.CompilerParams(
            dimension_semantics=("parallel",)),            # shards across TCs on v7x
    )(x2d, w1, b_packed, w2)

    return out2d.reshape(B, T, C)


def feedforward_reference(x, w1, b1, w2, b2):
    """Pure-JAX f32 reference matching the PyTorch forward (dropout = identity)."""
    h = jnp.maximum(jnp.einsum("btc,ch->bth", x, w1) + b1, 0.0)
    return jnp.einsum("bth,hc->btc", h, w2) + b2


if __name__ == "__main__":
    key = jax.random.PRNGKey(0)
    kx, k1, kb1, k2, kb2, kx2 = jax.random.split(key, 6)

    B, T, C = 2, BLOCK_SIZE, N_EMBD
    H = HIDDEN

    x = jax.random.normal(kx, (B, T, C), dtype=jnp.float32)

    # Deterministic init mimicking nn.Linear (uniform in +-1/sqrt(fan_in)), stored
    # transposed relative to PyTorch's (out_features, in_features) layout.
    bound1 = 1.0 / (C ** 0.5)
    w1 = jax.random.uniform(k1, (C, H), jnp.float32, -bound1, bound1)
    b1 = jax.random.uniform(kb1, (1, H), jnp.float32, -bound1, bound1)
    bound2 = 1.0 / (H ** 0.5)
    w2 = jax.random.uniform(k2, (H, C), jnp.float32, -bound2, bound2)
    b2 = jax.random.uniform(kb2, (1, C), jnp.float32, -bound2, bound2)

    ref = feedforward_reference(x, w1, b1, w2, b2)

    # Exact-semantics f32-operand path (tight tolerance).
    params_f32 = prepare_params(w1, b1, w2, b2, matmul_dtype=jnp.float32)
    out_f32 = feedforward_forward(x, params_f32)
    jax.block_until_ready(out_f32)
    assert out_f32.shape == (B, T, C)
    assert jnp.allclose(out_f32, ref, atol=1e-5, rtol=1e-5), "f32 mismatch vs reference"

    # Default fast path: bf16 MXU operands, f32 accumulation (looser tolerance).
    params_bf16 = prepare_params(w1, b1, w2, b2)
    out_bf16 = feedforward_forward(x, params_bf16)
    jax.block_until_ready(out_bf16)
    assert out_bf16.shape == (B, T, C)
    assert jnp.allclose(out_bf16, ref, atol=5e-2, rtol=5e-2), "bf16 mismatch vs reference"

    # Exercise the gridded path (resident weights, parallel token tiles).
    B2 = 64  # M = 512, block_m=256 -> grid=(2,)
    x_big = jax.random.normal(kx2, (B2, T, C), dtype=jnp.float32)
    ref_big = feedforward_reference(x_big, w1, b1, w2, b2)
    out_big = feedforward_forward(x_big, params_bf16, block_m=256)
    jax.block_until_ready(out_big)
    assert out_big.shape == (B2, T, C)
    assert jnp.allclose(out_big, ref_big, atol=5e-2, rtol=5e-2), "gridded bf16 mismatch"

    print("KERNEL_OK")
</pallas_src>

<mosaic_0001>
module attributes {stable_mosaic.version = 11 : i64} {
  func.func @_ffn_kernel(%arg0: i32, %arg1: memref<16x32xf32, #tpu.memory_space<vmem>>, %arg2: memref<32x128xf32, #tpu.memory_space<vmem>>, %arg3: memref<2x128xf32, #tpu.memory_space<vmem>>, %arg4: memref<128x32xf32, #tpu.memory_space<vmem>>, %arg5: memref<16x32xf32, #tpu.memory_space<vmem>>) attributes {dimension_semantics = [#tpu.dimension_semantics<parallel>], iteration_bounds = array<i64: 1>, scalar_prefetch = 0 : i64, scratch_operands = 0 : i64, tpu.core_type = #tpu.core_type<tc>, window_params = [{transform_indices = @transform_0, window_bounds = array<i64: 16, 32>}, {pipeline_mode = #tpu.pipeline_mode<synchronous>, transform_indices = @transform_1, window_bounds = array<i64: 32, 128>}, {pipeline_mode = #tpu.pipeline_mode<synchronous>, transform_indices = @transform_2, window_bounds = array<i64: 2, 128>}, {pipeline_mode = #tpu.pipeline_mode<synchronous>, transform_indices = @transform_3, window_bounds = array<i64: 128, 32>}, {transform_indices = @transform_4, window_bounds = array<i64: 16, 32>}]} {
    %c0 = arith.constant 0 : index
    %c0_0 = arith.constant 0 : index
    %0 = vector.load %arg1[%c0, %c0_0] : memref<16x32xf32, #tpu.memory_space<vmem>>, vector<16x32xf32>
    %c0_1 = arith.constant 0 : index
    %c0_2 = arith.constant 0 : index
    %1 = vector.load %arg2[%c0_1, %c0_2] : memref<32x128xf32, #tpu.memory_space<vmem>>, vector<32x128xf32>
    %cst = arith.constant dense<0.000000e+00> : vector<16x128xf32>
    %2 = tpu.matmul %0, %1, %cst {dimension_numbers = #tpu.dot_dimension_numbers<[1], [0], [0], [1], [0, 0, 1, 1], [], []>} : vector<16x32xf32>, vector<32x128xf32>, vector<16x128xf32> -> vector<16x128xf32>
    %c0_3 = arith.constant 0 : index
    %c0_4 = arith.constant 0 : index
    %3 = vector.load %arg3[%c0_3, %c0_4] : memref<2x128xf32, #tpu.memory_space<vmem>>, vector<1x128xf32>
    %4 = vector.broadcast %3 : vector<1x128xf32> to vector<16x128xf32>
    %5 = arith.addf %2, %4 : vector<16x128xf32>
    %cst_5 = arith.constant 0.000000e+00 : f32
    %6 = vector.broadcast %cst_5 : f32 to vector<16x128xf32>
    %7 = arith.maximumf %5, %6 : vector<16x128xf32>
    %c0_6 = arith.constant 0 : index
    %c0_7 = arith.constant 0 : index
    %8 = vector.load %arg4[%c0_6, %c0_7] : memref<128x32xf32, #tpu.memory_space<vmem>>, vector<128x32xf32>
    %cst_8 = arith.constant dense<0.000000e+00> : vector<16x32xf32>
    %9 = tpu.matmul %7, %8, %cst_8 {dimension_numbers = #tpu.dot_dimension_numbers<[1], [0], [0], [1], [0, 0, 1, 1], [], []>} : vector<16x128xf32>, vector<128x32xf32>, vector<16x32xf32> -> vector<16x32xf32>
    %c1 = arith.constant 1 : index
    %c0_9 = arith.constant 0 : index
    %10 = vector.load %arg3[%c1, %c0_9] : memref<2x128xf32, #tpu.memory_space<vmem>>, vector<1x32xf32>
    %11 = vector.broadcast %10 : vector<1x32xf32> to vector<16x32xf32>
    %12 = arith.addf %9, %11 : vector<16x32xf32>
    %c0_10 = arith.constant 0 : index
    %c0_11 = arith.constant 0 : index
    %13 = vector.load %arg5[%c0_10, %c0_11] : memref<16x32xf32, #tpu.memory_space<vmem>>, vector<16x32xf32>
    tpu.vector_store %arg5[%c0_10, %c0_11], %12 {strides = array<i32>} : memref<16x32xf32, #tpu.memory_space<vmem>>, vector<16x32xf32>,
    return
  }
  func.func @transform_0(%arg0: i32) -> (i32, i32) {
    %c0_i32 = arith.constant 0 : i32
    %c0_i32_0 = arith.constant 0 : i32
    return %arg0, %c0_i32 : i32, i32
  }
  func.func @transform_1(%arg0: i32) -> (i32, i32) {
    %c0_i32 = arith.constant 0 : i32
    %c0_i32_0 = arith.constant 0 : i32
    %c0_i32_1 = arith.constant 0 : i32
    return %c0_i32, %c0_i32_0 : i32, i32
  }
  func.func @transform_2(%arg0: i32) -> (i32, i32) {
    %c0_i32 = arith.constant 0 : i32
    %c0_i32_0 = arith.constant 0 : i32
    %c0_i32_1 = arith.constant 0 : i32
    return %c0_i32, %c0_i32_0 : i32, i32
  }
  func.func @transform_3(%arg0: i32) -> (i32, i32) {
    %c0_i32 = arith.constant 0 : i32
    %c0_i32_0 = arith.constant 0 : i32
    %c0_i32_1 = arith.constant 0 : i32
    return %c0_i32, %c0_i32_0 : i32, i32
  }
  func.func @transform_4(%arg0: i32) -> (i32, i32) {
    %c0_i32 = arith.constant 0 : i32
    %c0_i32_0 = arith.constant 0 : i32
    return %arg0, %c0_i32 : i32, i32
  }
}

</mosaic_0001>

<llo_original>
// kernel: tpu_custom_call.1
$region0: #{tpu_custom_call.1}
  #allocation0 [shape = 'u32[]', space=smem, size = 0x4, offset = 0x4, fixed_abs, tag = 'smem constant byte address 0x4 - core index']
  #allocation1 [shape = 'u32[72,128]{1,0:T(1,128)}', space=vmem, size = 0x9000, scoped, tag = 'internal scratch']
  %s0 = inlined_call_operand.vmem [shape: f32[16,32], index: 0, kind: input, shape index: {}]
  %s1 = inlined_call_operand.vmem [shape: f32[32,128], index: 1, kind: input, shape index: {}]
  %s2 = inlined_call_operand.vmem [shape: f32[2,128], index: 2, kind: input, shape index: {}]
  %s3 = inlined_call_operand.vmem [shape: f32[128,32], index: 3, kind: input, shape index: {}]
  %s4 = inlined_call_operand.hbm [shape: f32[16,32], index: 4, kind: output, shape index: {}]
  %s5 = sld [smem:[#allocation0]]
  $region26: #{tpu_custom_call.1} parent=0
    _
  %s7 = ssub.s32 1, %s5
  %s8 = scalar_select 0, %s7, %s5
  $region1: #{tpu_custom_call.1} parent=0
    #allocation2 [shape = 'u8[8192]{0}', space=vmem, size = 0x2000, scoped, tag = 'output window, operand 0, single buffered']
    #allocation3 [shape = 's32[1]{0}', space=sflag, size = 0x4, scoped, tag = 'scoped memory for tpu_custom_call.1']
    %9 = vsyncpa [#allocation3], 0
    // Predicated region
    $region2: #{tpu_custom_call.1} parent=1 // pred_check
      _
    $region3: #{tpu_custom_call.1} parent=1 // pred_check_branch
      %11 = sbr.rel (0) target = $region5
    $region4: #{tpu_custom_call.1} parent=1 // pred_region
      _
    $region5: #{tpu_custom_call.1} parent=1 // pred_fallthru
      _
    // Predicated region
    $region6: #{tpu_custom_call.1} parent=1 // pred_check
      _
    $region7: #{tpu_custom_call.1} parent=1 // pred_check_branch
      %13 = sbr.rel (0) target = $region9
    $region8: #{tpu_custom_call.1} parent=1 // pred_region
      _
    $region9: #{tpu_custom_call.1} parent=1 // pred_fallthru
      _
    // Predicated region
    $region10: #{tpu_custom_call.1} parent=1 // pred_check
      _
    $region11: #{tpu_custom_call.1} parent=1 // pred_check_branch
      %15 = sbr.rel (0) target = $region13
    $region12: #{tpu_custom_call.1} parent=1 // pred_region
      _
    $region13: #{tpu_custom_call.1} parent=1 // pred_fallthru
      _
    // Predicated region
    $region14: #{tpu_custom_call.1} parent=1 // pred_check
      _
    $region15: #{tpu_custom_call.1} parent=1 // pred_check_branch
      %17 = sbr.rel (0) target = $region17
    $region16: #{tpu_custom_call.1} parent=1 // pred_region
      _
    $region17: #{tpu_custom_call.1} parent=1 // pred_fallthru
      _
    %v18 = vld [vmem:[%s0] sm:$0xff]
    %v19 = vld [vmem:[%s0 + $0x8] sm:$0xff]
    %v20 = vld [vmem:[%s1] sm:$0xff]
    %v21 = vld [vmem:[%s1 + $0x8] sm:$0xff]
    %v22 = vld [vmem:[%s1 + $0x10] sm:$0xff]
    %v23 = vld [vmem:[%s1 + $0x18] sm:$0xff]
    %v24 = vld [vmem:[%s2] sm:$0x1]
    %v25 = vperm.slane %v24, 0
    %vm26 = vcmask 261120
    %v28 = vsel %vm26, %v18, 0
    %v31 = vsel %vm26, %v19, 0
    %33 = vmatpush.msra.mxu0 0.0
    %34 = vmatpush.msra.mxu0 0.0
    %35 = vmatpush.msra.mxu0 0.0
    %36 = vmatpush.msra.mxu0 0.0
    %37 = vmatpush.msra.mxu0 0.0
    %38 = vmatpush.msra.mxu0 0.0
    %39 = vmatpush.msra.mxu0 0.0
    %40 = vmatpush.msra.mxu0 0.0
    %41 = vmatpush.msra.mxu0 0.0
    %42 = vmatpush.msra.mxu0 0.0
    %43 = vmatpush.msra.mxu0 0.0
    %44 = vmatpush.msra.mxu0 0.0
    %45 = vmatpush.msra.mxu0 %v23
    %46 = vmatpush.msra.mxu0 %v22
    %47 = vmatpush.msra.mxu0 %v21
    %48 = vmatpush.msra.mxu0 %v20
    %49 = vmatmul.f32.gmra.mxu0 %v28
    %v50 = vpop.f32.mrf.mxu0
    %v51 = vadd.f32 %v25, %v50
    %52 = vmatmul.f32.gmra.mxu0 %v31
    %v53 = vpop.f32.mrf.mxu0
    %v54 = vadd.f32 %v25, %v53
    %55 = vdwg.mxu0
    %v56 = vmax.f32 %v51, 0.0
    %v57 = vmax.f32 %v54, 0.0
    %v58 = vld [vmem:[%s3] sm:$0xff]
    %v59 = vld [vmem:[%s3 + $0x8] sm:$0xff]
    %v60 = vld [vmem:[%s3 + $0x10] sm:$0xff]
    %v61 = vld [vmem:[%s3 + $0x18] sm:$0xff]
    %v62 = vld [vmem:[%s3 + $0x20] sm:$0xff]
    %v63 = vld [vmem:[%s3 + $0x28] sm:$0xff]
    %v64 = vld [vmem:[%s3 + $0x30] sm:$0xff]
    %v65 = vld [vmem:[%s3 + $0x38] sm:$0xff]
    %v66 = vld [vmem:[%s3 + $0x40] sm:$0xff]
    %v67 = vld [vmem:[%s3 + $0x48] sm:$0xff]
    %v68 = vld [vmem:[%s3 + $0x50] sm:$0xff]
    %v69 = vld [vmem:[%s3 + $0x58] sm:$0xff]
    %v70 = vld [vmem:[%s3 + $0x60] sm:$0xff]
    %v71 = vld [vmem:[%s3 + $0x68] sm:$0xff]
    %v72 = vld [vmem:[%s3 + $0x70] sm:$0xff]
    %v73 = vld [vmem:[%s3 + $0x78] sm:$0xff]
    %v74 = vld [vmem:[%s2 + $0x1] sm:$0x1]
    %v75 = vperm.slane %v74, 0
    %76 = vmatpush.msra.mxu0 %v73
    %77 = vmatpush.msra.mxu0 %v72
    %78 = vmatpush.msra.mxu0 %v71
    %79 = vmatpush.msra.mxu0 %v70
    %80 = vmatpush.msra.mxu0 %v69
    %81 = vmatpush.msra.mxu0 %v68
    %82 = vmatpush.msra.mxu0 %v67
    %83 = vmatpush.msra.mxu0 %v66
    %84 = vmatpush.msra.mxu0 %v65
    %85 = vmatpush.msra.mxu0 %v64
    %86 = vmatpush.msra.mxu0 %v63
    %87 = vmatpush.msra.mxu0 %v62
    %88 = vmatpush.msra.mxu0 %v61
    %89 = vmatpush.msra.mxu0 %v60
    %90 = vmatpush.msra.mxu0 %v59
    %91 = vmatpush.msra.mxu0 %v58
    %92 = vmatmul.f32.gmra.mxu0 %v56
    %v93 = vpop.f32.mrf.mxu0
    %v94 = vadd.f32 %v75, %v93
    %95 = vmatmul.f32.gmra.mxu0 %v57
    %v96 = vpop.f32.mrf.mxu0
    %v97 = vadd.f32 %v75, %v96
    %98 = vdwg.mxu0
    %99 = vst.msk [vmem:[#allocation2] sm:$0xff] %vm26, %v94
    %100 = vst.msk [vmem:[#allocation2 + $0x8] sm:$0xff] %vm26, %v97
    // Predicated region
    $region18: #{tpu_custom_call.1} parent=1 // pred_check
      _
    $region19: #{tpu_custom_call.1} parent=1 // pred_check_branch
      %102 = sbr.rel (0) target = $region21
    $region20: #{tpu_custom_call.1} parent=1 // pred_region
      %104 = vsyncadd [#allocation3], 0
      %s105 = sshll.u32 [#allocation2], 4
      %s106 = int_to_ptr.vmem [resolvable:$true] %s105
      %s107 = sshll.u32 %s4, 4
      %s108 = int_to_ptr.hbm [resolvable:$true] %s107
      %113 = dma.vmem_to_hbm [thread:$0]  %s106, 256, %s108, [#allocation3], 128, 128, 8
    $region21: #{tpu_custom_call.1} parent=1 // pred_fallthru
      _
    // Predicated region
    $region22: #{tpu_custom_call.1} parent=1 // pred_check
      _
    $region23: #{tpu_custom_call.1} parent=1 // pred_check_branch
      %115 = sbr.rel (0) target = $region25
    $region24: #{tpu_custom_call.1} parent=1 // pred_region
      %117 = dma.done [#allocation3], 256
    $region25: #{tpu_custom_call.1} parent=1 // pred_fallthru
      _
    %118 = vsyncpa [#allocation3], 1

</llo_original>
